<compile_context>
chip_gen: v7x
topology: tpu7x:2x2x1
jax: 0.10.0
libtpu: 0.0.40
codegen_flags: <defaults>
</compile_context>

<pallas_src>
import jax
import jax.numpy as jnp
from jax.experimental import pallas as pl
from jax.experimental.pallas import tpu as pltpu

LANES = 128           # vreg lane width (fast axis)
SUBLANES = 8          # f32 sublane granularity
TILE_ROWS_MAX = 4096  # (4096, 128) f32 tile = 2 MiB per block
MIN_KERNEL_N = 8192   # below this, plain fused XLA elementwise is faster


def _round_up(value, multiple):
    return (value + multiple - 1) // multiple * multiple


def _linear_kernel(w_ref, b_ref, x_ref, o_ref):
    # w_ref, b_ref: f32[1] in SMEM (constant block index -> fetched once).
    # x_ref, o_ref: (tile_rows, 128) lane-dense tiles in VMEM; o aliases x's
    # HBM buffer (each grid block is read before it is overwritten).
    w = w_ref[0]
    b = b_ref[0]
    # VPU fused multiply-add in f32 (the cast is a no-op for the f32 spec
    # dtype; on bf16-capable chips a bf16 path would halve vreg traffic but
    # the module is f32 end-to-end).
    o_ref[...] = (x_ref[...].astype(jnp.float32) * w + b).astype(o_ref.dtype)


def linear_forward(x, weight, bias, *, min_kernel_n=MIN_KERNEL_N):
    """y = x @ weight.T + bias, with weight (1, 1), bias (1,), x (N, 1)."""
    n, f = x.shape
    assert f == 1, "LinearModel expects in_features == 1"
    out_dtype = x.dtype

    w_f32 = weight.reshape(()).astype(jnp.float32)
    b_f32 = bias.reshape(()).astype(jnp.float32)

    # Small-N fallback: kernel launch + pad/slice overhead (several us) is
    # strictly slower than a single fused XLA elementwise op.
    if n < min_kernel_n:
        return (x.astype(jnp.float32) * w_f32 + b_f32).astype(out_dtype)

    w_smem = w_f32.reshape(1)
    b_smem = b_f32.reshape(1)

    # ---- Lane-dense slab: (N, 1) -> (rows8, 128) ----
    # Pad only to a sublane-aligned row count (at most 1023 extra elements),
    # not to a tile multiple; the ragged last grid block is masked by Pallas.
    rows = pl.cdiv(n, LANES)
    rows8 = _round_up(rows, SUBLANES)
    padded_n = rows8 * LANES
    x_flat = x.reshape(n)
    if padded_n != n:
        x_flat = jnp.pad(x_flat, (0, padded_n - n))
    x_slab = x_flat.reshape(rows8, LANES)

    # Adaptive tile: target >= 4 grid blocks (so v7x's two TensorCores both
    # engage at moderate N), capped at 2 MiB per block to amortize per-step
    # overhead while keeping buffered in+out well under every chip's
    # scoped-VMEM default (v5e 16 MiB / v6e 32 MiB / v7x 32 MiB).
    tile_rows = min(TILE_ROWS_MAX,
                    max(SUBLANES, _round_up(pl.cdiv(rows8, 4), SUBLANES)))
    num_blocks = pl.cdiv(rows8, tile_rows)

    x_index = lambda i: (i, 0)
    # 3-deep buffering on the streaming input hides DMA issue latency (compute
    # per tile is tiny); guarded so older jax versions still run unbuffered.
    if num_blocks >= 3 and hasattr(pl, "Buffered"):
        try:
            x_spec = pl.BlockSpec((tile_rows, LANES), x_index,
                                  pipeline_mode=pl.Buffered(3))
        except TypeError:
            x_spec = pl.BlockSpec((tile_rows, LANES), x_index)
    else:
        x_spec = pl.BlockSpec((tile_rows, LANES), x_index)

    itemsize = jnp.dtype(out_dtype).itemsize
    y_slab = pl.pallas_call(
        _linear_kernel,
        out_shape=jax.ShapeDtypeStruct((rows8, LANES), out_dtype),
        grid=(num_blocks,),
        in_specs=[
            # f32[1] scalars in SMEM; constant block index -> fetched once.
            pl.BlockSpec((1,), lambda i: (0,),
                         memory_space=pltpu.MemorySpace.SMEM),
            pl.BlockSpec((1,), lambda i: (0,),
                         memory_space=pltpu.MemorySpace.SMEM),
            # Lane-dense input tiles, auto-pipelined.
            x_spec,
        ],
        out_specs=pl.BlockSpec((tile_rows, LANES), x_index),
        # Output slab reuses x_slab's HBM buffer: no second padded_n buffer.
        input_output_aliases={2: 0},
        compiler_params=pltpu.CompilerParams(
            dimension_semantics=("parallel",),
            vmem_limit_bytes=32 * 1024 * 1024,
        ),
        cost_estimate=pl.CostEstimate(
            flops=2 * padded_n,
            transcendentals=0,
            bytes_accessed=2 * padded_n * itemsize,
        ),
    )(w_smem, b_smem, x_slab)

    y_flat = y_slab.reshape(padded_n)
    if padded_n != n:
        # Padded lanes hold 0*w + b = b; they are discarded here.
        y_flat = y_flat[:n]
    return y_flat.reshape(n, 1)


if __name__ == "__main__":
    key = jax.random.PRNGKey(0)
    k_w, k_b = jax.random.split(key)

    # Deterministic parameter init mimicking torch.nn.Linear(1, 1) default:
    # uniform(-1/sqrt(in_features), 1/sqrt(in_features)) = uniform(-1, 1).
    weight = jax.random.uniform(k_w, (1, 1), jnp.float32, minval=-1.0, maxval=1.0)
    bias = jax.random.uniform(k_b, (1,), jnp.float32, minval=-1.0, maxval=1.0)

    def reference(xv):
        return xv @ weight.T + bias

    # Primary input per the spec: x = linspace(0, 15, 100) as (100, 1).
    x = jnp.linspace(0.0, 15.0, 100, dtype=jnp.float32).reshape(100, 1)

    # (a) Default path: small-N fallback (fused XLA elementwise).
    y = jax.block_until_ready(linear_forward(x, weight, bias))
    assert y.shape == (100, 1)
    assert jnp.allclose(y, reference(x), atol=1e-6, rtol=1e-6)

    # (b) Force the Pallas kernel at the spec shape (single (8, 128) block).
    y_k = jax.block_until_ready(linear_forward(x, weight, bias, min_kernel_n=0))
    assert y_k.shape == (100, 1)
    assert jnp.allclose(y_k, reference(x), atol=1e-6, rtol=1e-6)

    # (c) Mid-size N: 4 adaptive blocks including a ragged (masked) last block.
    n_mid = 50_000
    x_mid = jnp.linspace(-3.0, 3.0, n_mid, dtype=jnp.float32).reshape(n_mid, 1)
    y_mid = jax.block_until_ready(linear_forward(x_mid, weight, bias))
    assert y_mid.shape == (n_mid, 1)
    assert jnp.allclose(y_mid, reference(x_mid), atol=1e-5, rtol=1e-5)

    # (d) Larger N: hits the 2 MiB tile cap (tile_rows = 4096), 5 grid blocks
    # with a ragged tail — exercises aliasing + deeper buffering.
    n_big = 2_200_000
    x_big = jnp.linspace(-5.0, 5.0, n_big, dtype=jnp.float32).reshape(n_big, 1)
    y_big = jax.block_until_ready(linear_forward(x_big, weight, bias))
    assert y_big.shape == (n_big, 1)
    assert jnp.allclose(y_big, reference(x_big), atol=1e-5, rtol=1e-5)

    print("KERNEL_OK")
</pallas_src>

<mosaic_0001>
module attributes {stable_mosaic.version = 11 : i64} {
  func.func @_linear_kernel(%arg0: i32, %arg1: memref<1xf32, #tpu.memory_space<smem>>, %arg2: memref<1xf32, #tpu.memory_space<smem>>, %arg3: memref<8x128xf32, #tpu.memory_space<vmem>>, %arg4: memref<8x128xf32, #tpu.memory_space<vmem>>) attributes {dimension_semantics = [#tpu.dimension_semantics<parallel>], iteration_bounds = array<i64: 1>, scalar_prefetch = 0 : i64, scratch_operands = 0 : i64, tpu.core_type = #tpu.core_type<tc>, window_params = [{transform_indices = @transform_0, window_bounds = array<i64: 1>}, {transform_indices = @transform_1, window_bounds = array<i64: 1>}, {transform_indices = @transform_2, window_bounds = array<i64: 8, 128>}, {transform_indices = @transform_3, window_bounds = array<i64: 8, 128>}]} {
    %c0 = arith.constant 0 : index
    %0 = memref.load %arg1[%c0] : memref<1xf32, #tpu.memory_space<smem>>
    %c0_0 = arith.constant 0 : index
    %1 = memref.load %arg2[%c0_0] : memref<1xf32, #tpu.memory_space<smem>>
    %c0_1 = arith.constant 0 : index
    %c0_2 = arith.constant 0 : index
    %2 = vector.load %arg3[%c0_1, %c0_2] : memref<8x128xf32, #tpu.memory_space<vmem>>, vector<8x128xf32>
    %3 = vector.broadcast %0 : f32 to vector<8x128xf32>
    %4 = arith.mulf %2, %3 : vector<8x128xf32>
    %5 = vector.broadcast %1 : f32 to vector<8x128xf32>
    %6 = arith.addf %4, %5 : vector<8x128xf32>
    %c0_3 = arith.constant 0 : index
    %c0_4 = arith.constant 0 : index
    %7 = vector.load %arg4[%c0_3, %c0_4] : memref<8x128xf32, #tpu.memory_space<vmem>>, vector<8x128xf32>
    tpu.vector_store %arg4[%c0_3, %c0_4], %6 {strides = array<i32>} : memref<8x128xf32, #tpu.memory_space<vmem>>, vector<8x128xf32>,
    return
  }
  func.func @transform_0(%arg0: i32) -> i32 {
    %c0_i32 = arith.constant 0 : i32
    %c0_i32_0 = arith.constant 0 : i32
    return %c0_i32 : i32
  }
  func.func @transform_1(%arg0: i32) -> i32 {
    %c0_i32 = arith.constant 0 : i32
    %c0_i32_0 = arith.constant 0 : i32
    return %c0_i32 : i32
  }
  func.func @transform_2(%arg0: i32) -> (i32, i32) {
    %c0_i32 = arith.constant 0 : i32
    %c0_i32_0 = arith.constant 0 : i32
    return %arg0, %c0_i32 : i32, i32
  }
  func.func @transform_3(%arg0: i32) -> (i32, i32) {
    %c0_i32 = arith.constant 0 : i32
    %c0_i32_0 = arith.constant 0 : i32
    return %arg0, %c0_i32 : i32, i32
  }
}

</mosaic_0001>

<llo_original>
// kernel: tpu_custom_call.1
$region0: #{tpu_custom_call.1}
  #allocation0 [shape = 'u32[]', space=smem, size = 0x4, offset = 0x4, fixed_abs, tag = 'smem constant byte address 0x4 - core index']
  #allocation1 [shape = 'u32[144,128]{1,0:T(1,128)}', space=vmem, size = 0x12000, scoped, tag = 'internal scratch']
  #allocation2 [shape = 'f32[1]{0:T(128)S(6)}', space=smem, size = 0x200, scoped, tag = 'scoped memory for tpu_custom_call.1']
  #allocation3 [shape = 'f32[1]{0:T(128)S(6)}', space=smem, size = 0x200, scoped, tag = 'scoped memory for tpu_custom_call.1']
  %s0 = inlined_call_operand.<no memory space> [shape: f32[1], index: 0, kind: input, shape index: {}]
  %s1 = inlined_call_operand.<no memory space> [shape: f32[1], index: 1, kind: input, shape index: {}]
  %s2 = inlined_call_operand.hbm [shape: f32[8,128], index: 2, kind: input, shape index: {}, may-alias: {2,3}]
  %s3 = inlined_call_operand.hbm [shape: f32[8,128], index: 3, kind: output, shape index: {}, may-alias: {2,3}]
  %s4 = sld [smem:[#allocation0]]
  $region26: #{tpu_custom_call.1} parent=0
    _
  %s6 = ssub.s32 1, %s4
  %s7 = scalar_select 0, %s6, %s4
  %8 = sst [smem:[#allocation2]] %s0
  %9 = sst [smem:[#allocation3]] %s1
  $region1: #{tpu_custom_call.1} parent=0
    #allocation4 [shape = 'u8[4096]{0}', space=vmem, size = 0x1000, scoped, tag = 'input window, operand 2, single buffered']
    #allocation5 [shape = 's32[1]{0}', space=sflag, size = 0x4, scoped, tag = 'scoped memory for tpu_custom_call.1']
    #allocation6 [shape = 's32[1]{0}', space=sflag, size = 0x4, scoped, tag = 'scoped memory for tpu_custom_call.1']
    #allocation7 [shape = 'u8[4096]{0}', space=vmem, size = 0x1000, scoped, tag = 'output window, operand 0, single buffered']
    %10 = vsyncpa [#allocation5], 0
    %11 = vsyncpa [#allocation6], 0
    // Predicated region
    $region2: #{tpu_custom_call.1} parent=1 // pred_check
      _
    $region3: #{tpu_custom_call.1} parent=1 // pred_check_branch
      %13 = sbr.rel (0) target = $region5
    $region4: #{tpu_custom_call.1} parent=1 // pred_region
      _
    $region5: #{tpu_custom_call.1} parent=1 // pred_fallthru
      _
    // Predicated region
    $region6: #{tpu_custom_call.1} parent=1 // pred_check
      _
    $region7: #{tpu_custom_call.1} parent=1 // pred_check_branch
      %15 = sbr.rel (0) target = $region9
    $region8: #{tpu_custom_call.1} parent=1 // pred_region
      _
    $region9: #{tpu_custom_call.1} parent=1 // pred_fallthru
      _
    // Predicated region
    $region10: #{tpu_custom_call.1} parent=1 // pred_check
      _
    $region11: #{tpu_custom_call.1} parent=1 // pred_check_branch
      %17 = sbr.rel (0) target = $region13
    $region12: #{tpu_custom_call.1} parent=1 // pred_region
      %s19 = ssub.s32 128, 128
      %20 = vsyncadd [#allocation5], %s19
      %s22 = sshll.u32 [#allocation4], 4
      %s23 = int_to_ptr.vmem [resolvable:$true] %s22
      %25 = dma.hbm_to_vmem [thread:$0]  %s2, 128, %s23, [#allocation5]
    $region13: #{tpu_custom_call.1} parent=1 // pred_fallthru
      _
    // Predicated region
    $region14: #{tpu_custom_call.1} parent=1 // pred_check
      _
    $region15: #{tpu_custom_call.1} parent=1 // pred_check_branch
      %27 = sbr.rel (0) target = $region17
    $region16: #{tpu_custom_call.1} parent=1 // pred_region
      %28 = dma.done [#allocation5], 128
    $region17: #{tpu_custom_call.1} parent=1 // pred_fallthru
      _
    %s29 = sld [smem:[#allocation2]]
    %s30 = sld [smem:[#allocation3]]
    %v31 = vld [vmem:[#allocation4] sm:$0xff]
    %v32 = vstv %s29
    %v33 = vmul.f32 %v31, %v32
    %v34 = vstv %s30
    %v35 = vadd.f32 %v33, %v34
    %36 = vst [vmem:[#allocation7] sm:$0xff] %v35
    // Predicated region
    $region18: #{tpu_custom_call.1} parent=1 // pred_check
      _
    $region19: #{tpu_custom_call.1} parent=1 // pred_check_branch
      %38 = sbr.rel (0) target = $region21
    $region20: #{tpu_custom_call.1} parent=1 // pred_region
      %s40 = ssub.s32 128, 128
      %41 = vsyncadd [#allocation6], %s40
      %s43 = sshll.u32 [#allocation7], 4
      %s44 = int_to_ptr.vmem [resolvable:$true] %s43
      %46 = dma.vmem_to_hbm [thread:$0]  %s44, 128, %s3, [#allocation6]
    $region21: #{tpu_custom_call.1} parent=1 // pred_fallthru
      _
    // Predicated region
    $region22: #{tpu_custom_call.1} parent=1 // pred_check
      _
    $region23: #{tpu_custom_call.1} parent=1 // pred_check_branch
      %48 = sbr.rel (0) target = $region25
    $region24: #{tpu_custom_call.1} parent=1 // pred_region
      %49 = dma.done [#allocation6], 128
    $region25: #{tpu_custom_call.1} parent=1 // pred_fallthru
      _
    %50 = vsyncpa [#allocation5], 1
    %51 = vsyncpa [#allocation6], 1

</llo_original>
